<compile_context>
chip_gen: v7x
topology: tpu7x:2x2x1
jax: 0.10.0
libtpu: 0.0.40
codegen_flags: <defaults>
</compile_context>

<pallas_src>
import math
import jax
import jax.numpy as jnp
from jax.experimental import pallas as pl
from jax.experimental.pallas import tpu as pltpu

IN_DIM = 16
H1_DIM = 32
H2_DIM = 64
OUT_DIM = 81
PAD = 128  # lane-dense padded width for weights / biases / all layer outputs


def _round_up(n, m):
    return ((n + m - 1) // m) * m


def dqn_kernel(x_ref, w_ref, b_ref, o_ref):
    # x_ref: (TM, 16) f32 | w_ref: (3, 128, 128) bf16/f32 | b_ref: (3, 128) f32
    # o_ref: (TM, 128) f32 (cols >= 81 stay zero because w3/b3 are zero-padded)
    mxu_dtype = w_ref.dtype                 # bf16 weights -> bf16 MXU operands
    x = x_ref[...].astype(mxu_dtype)        # (TM, 16)

    w1 = w_ref[0, 0:IN_DIM, :]              # (16, 128)  cols >= 32 are zero
    w2 = w_ref[1]                           # (128, 128) rows >= 32 / cols >= 64 zero
    w3 = w_ref[2]                           # (128, 128) rows >= 64 / cols >= 81 zero
    b1 = b_ref[0:1, :]                      # (1, 128) f32
    b2 = b_ref[1:2, :]
    b3 = b_ref[2:3, :]

    # MXU runs on (b)f16 operands, accumulates in f32; bias add + LeakyReLU stay f32
    # on the VPU (v5e has no bf16 VPU/EUP path).
    h1 = jnp.dot(x, w1, preferred_element_type=jnp.float32) + b1
    h1 = jnp.maximum(h1, 0.1 * h1)          # LeakyReLU(0.1); padded lanes stay 0

    h2 = jnp.dot(h1.astype(mxu_dtype), w2, preferred_element_type=jnp.float32) + b2
    h2 = jnp.maximum(h2, 0.1 * h2)

    o_ref[...] = jnp.dot(h2.astype(mxu_dtype), w3, preferred_element_type=jnp.float32) + b3


def pack_params(params, mxu_dtype=jnp.bfloat16):
    """Zero-pad + stack the 3 weights / 3 biases into two VMEM-friendly buffers.

    Weights MUST be (in, out); PyTorch stores nn.Linear weights as (out, in) and
    would need a transpose before calling this.  Biases are kept f32 (f32 epilogue).
    """
    w1, b1, w2, b2, w3, b3 = params
    assert w1.shape == (IN_DIM, H1_DIM), "expected (in, out) weight layout"
    assert w2.shape == (H1_DIM, H2_DIM), "expected (in, out) weight layout"
    assert w3.shape == (H2_DIM, OUT_DIM), "expected (in, out) weight layout"

    w_all = jnp.zeros((3, PAD, PAD), jnp.float32)
    w_all = w_all.at[0, :IN_DIM, :H1_DIM].set(w1)
    w_all = w_all.at[1, :H1_DIM, :H2_DIM].set(w2)
    w_all = w_all.at[2, :H2_DIM, :OUT_DIM].set(w3)
    b_all = jnp.zeros((3, PAD), jnp.float32)
    b_all = b_all.at[0, :H1_DIM].set(b1.reshape(-1))
    b_all = b_all.at[1, :H2_DIM].set(b2.reshape(-1))
    b_all = b_all.at[2, :OUT_DIM].set(b3.reshape(-1))
    return w_all.astype(mxu_dtype), b_all


def _choose_tile(batch, block_rows):
    """Pick (tm, padded_batch): largest batch tile with <=~10% dead-row padding,
    preferring >=2 grid steps so v7x megacore ("parallel") sharding engages."""
    b8 = _round_up(max(batch, 1), 8)
    for tm in (1024, 512, 256, 128, 64, 32, 16, 8):
        if tm > block_rows or tm > b8:
            continue
        padded = _round_up(b8, tm)
        if tm != 8:
            if padded - b8 > max(8, 0.10 * b8):   # bound padding waste
                continue
            if padded // tm < 2:                  # keep >=2 steps for 2-TC chips
                continue
        return tm, padded
    return 8, b8


def _pallas_forward(x_padded, w_all, b_all, tm, *, single_buffer_weights):
    b_padded = x_padded.shape[0]
    grid = (b_padded // tm,)
    const_kwargs = dict(pipeline_mode=pl.Buffered(1)) if single_buffer_weights else {}
    return pl.pallas_call(
        dqn_kernel,
        out_shape=jax.ShapeDtypeStruct((b_padded, PAD), jnp.float32),
        grid=grid,
        in_specs=[
            pl.BlockSpec((tm, IN_DIM), lambda i: (i, 0)),                       # x: tiled over batch
            pl.BlockSpec((3, PAD, PAD), lambda i: (0, 0, 0), **const_kwargs),   # weights: VMEM-resident
            pl.BlockSpec((3, PAD), lambda i: (0, 0), **const_kwargs),           # biases: VMEM-resident
        ],
        out_specs=pl.BlockSpec((tm, PAD), lambda i: (i, 0)),                    # lane-dense stores
        compiler_params=pltpu.CompilerParams(
            dimension_semantics=("parallel",),   # shard batch steps across v7x's 2 TCs
        ),
    )(x_padded, w_all, b_all)


def dqn_forward(x, w_all, b_all, *, block_rows=512):
    """x: (B, 16) f32.  Returns the PADDED (b_padded, 128) f32 kernel output.

    Valid data is out[:B, :81]; all other entries are zero.  The padded slab is
    returned as-is (no wrapper slice) so there is no extra HBM read+write pass —
    consumers should index [:B, :81] lazily.
    """
    B, din = x.shape
    assert din == IN_DIM
    tm, b_padded = _choose_tile(B, block_rows)
    if b_padded != B:
        x = jnp.pad(x, ((0, b_padded - B), (0, 0)))
    try:
        return _pallas_forward(x, w_all, b_all, tm, single_buffer_weights=True)
    except Exception:
        # pl.Buffered(1) on constant-index blocks is only a minor VMEM nicety;
        # fall back to default double-buffering if this JAX build rejects it.
        return _pallas_forward(x, w_all, b_all, tm, single_buffer_weights=False)


def init_params(key):
    """Matches the PyTorch module: kaiming_normal_(mode='fan_in',
    nonlinearity='leaky_relu', default a=0 -> gain=sqrt(2)) for weights;
    nn.Linear default uniform bias.  Weights stored as (in, out)."""
    dims = [(IN_DIM, H1_DIM), (H1_DIM, H2_DIM), (H2_DIM, OUT_DIM)]
    params = []
    for fan_in, fan_out in dims:
        kw, kb, key = jax.random.split(key, 3)
        std = math.sqrt(2.0) / math.sqrt(fan_in)
        w = std * jax.random.normal(kw, (fan_in, fan_out), dtype=jnp.float32)
        bound = 1.0 / math.sqrt(fan_in)
        b = jax.random.uniform(kb, (1, fan_out), dtype=jnp.float32,
                               minval=-bound, maxval=bound)
        params.extend([w, b])
    return tuple(params)


def reference_forward(x, params, mxu_dtype=jnp.float32):
    """Pure-JAX reference matching the kernel's casting scheme."""
    w1, b1, w2, b2, w3, b3 = params
    hi = jax.lax.Precision.HIGHEST
    c = lambda a: a.astype(mxu_dtype)
    lrelu = lambda v: jnp.maximum(v, 0.1 * v)
    h1 = lrelu(jnp.dot(c(x), c(w1), precision=hi, preferred_element_type=jnp.float32) + b1)
    h2 = lrelu(jnp.dot(c(h1), c(w2), precision=hi, preferred_element_type=jnp.float32) + b2)
    return jnp.dot(c(h2), c(w3), precision=hi, preferred_element_type=jnp.float32) + b3


if __name__ == "__main__":
    key = jax.random.PRNGKey(0)
    kx, kp = jax.random.split(key)
    params = init_params(kp)

    # --- production path: bf16 MXU operands, small batch (single grid step) ---
    B = 8
    x = jax.random.normal(kx, (B, IN_DIM), dtype=jnp.float32)
    w_all, b_all = pack_params(params, mxu_dtype=jnp.bfloat16)
    out_padded = jax.block_until_ready(dqn_forward(x, w_all, b_all))
    assert out_padded.shape == (B, PAD), out_padded.shape
    out = out_padded[:B, :OUT_DIM]                        # test-harness view only
    ref = reference_forward(x, params, mxu_dtype=jnp.bfloat16)
    assert jnp.allclose(out, ref, atol=1e-2, rtol=1e-2), "bf16 path mismatch vs reference"
    assert bool(jnp.all(out_padded[:, OUT_DIM:] == 0.0)), "padded output lanes not zero"

    # --- accuracy path + multi-step grid with batch padding: f32 weights ---
    B2 = 40
    x2 = jax.random.normal(jax.random.PRNGKey(1), (B2, IN_DIM), dtype=jnp.float32)
    w32, b32 = pack_params(params, mxu_dtype=jnp.float32)
    out2_padded = jax.block_until_ready(dqn_forward(x2, w32, b32))
    out2 = out2_padded[:B2, :OUT_DIM]
    ref2 = reference_forward(x2, params, mxu_dtype=jnp.float32)
    assert jnp.allclose(out2, ref2, atol=1e-3, rtol=1e-3), "f32 path mismatch vs reference"

    print("KERNEL_OK")
</pallas_src>

<mosaic_0001>
module attributes {stable_mosaic.version = 11 : i64} {
  func.func @dqn_kernel(%arg0: i32, %arg1: memref<8x16xf32, #tpu.memory_space<vmem>>, %arg2: memref<3x128x128xbf16, #tpu.memory_space<vmem>>, %arg3: memref<3x128xf32, #tpu.memory_space<vmem>>, %arg4: memref<8x128xf32, #tpu.memory_space<vmem>>) attributes {dimension_semantics = [#tpu.dimension_semantics<parallel>], iteration_bounds = array<i64: 1>, scalar_prefetch = 0 : i64, scratch_operands = 0 : i64, tpu.core_type = #tpu.core_type<tc>, window_params = [{transform_indices = @transform_0, window_bounds = array<i64: 8, 16>}, {pipeline_mode = #tpu.pipeline_mode<synchronous>, transform_indices = @transform_1, window_bounds = array<i64: 3, 128, 128>}, {pipeline_mode = #tpu.pipeline_mode<synchronous>, transform_indices = @transform_2, window_bounds = array<i64: 3, 128>}, {transform_indices = @transform_3, window_bounds = array<i64: 8, 128>}]} {
    %c0 = arith.constant 0 : index
    %c0_0 = arith.constant 0 : index
    %0 = vector.load %arg1[%c0, %c0_0] : memref<8x16xf32, #tpu.memory_space<vmem>>, vector<8x16xf32>
    %1 = arith.truncf %0 : vector<8x16xf32> to vector<8x16xbf16>
    %c0_1 = arith.constant 0 : index
    %c0_2 = arith.constant 0 : index
    %c0_3 = arith.constant 0 : index
    %2 = vector.load %arg2[%c0_1, %c0_2, %c0_3] : memref<3x128x128xbf16, #tpu.memory_space<vmem>>, vector<1x16x128xbf16>
    %3 = vector.shape_cast %2 : vector<1x16x128xbf16> to vector<16x128xbf16>
    %c1 = arith.constant 1 : index
    %c0_4 = arith.constant 0 : index
    %c0_5 = arith.constant 0 : index
    %4 = vector.load %arg2[%c1, %c0_4, %c0_5] : memref<3x128x128xbf16, #tpu.memory_space<vmem>>, vector<1x128x128xbf16>
    %5 = vector.shape_cast %4 : vector<1x128x128xbf16> to vector<128x128xbf16>
    %c2 = arith.constant 2 : index
    %c0_6 = arith.constant 0 : index
    %c0_7 = arith.constant 0 : index
    %6 = vector.load %arg2[%c2, %c0_6, %c0_7] : memref<3x128x128xbf16, #tpu.memory_space<vmem>>, vector<1x128x128xbf16>
    %7 = vector.shape_cast %6 : vector<1x128x128xbf16> to vector<128x128xbf16>
    %c0_8 = arith.constant 0 : index
    %c0_9 = arith.constant 0 : index
    %8 = vector.load %arg3[%c0_8, %c0_9] : memref<3x128xf32, #tpu.memory_space<vmem>>, vector<1x128xf32>
    %c1_10 = arith.constant 1 : index
    %c0_11 = arith.constant 0 : index
    %9 = vector.load %arg3[%c1_10, %c0_11] : memref<3x128xf32, #tpu.memory_space<vmem>>, vector<1x128xf32>
    %c2_12 = arith.constant 2 : index
    %c0_13 = arith.constant 0 : index
    %10 = vector.load %arg3[%c2_12, %c0_13] : memref<3x128xf32, #tpu.memory_space<vmem>>, vector<1x128xf32>
    %cst = arith.constant dense<0.000000e+00> : vector<8x128xf32>
    %11 = tpu.matmul %1, %3, %cst {dimension_numbers = #tpu.dot_dimension_numbers<[1], [0], [0], [1], [0, 0, 1, 1], [], []>} : vector<8x16xbf16>, vector<16x128xbf16>, vector<8x128xf32> -> vector<8x128xf32>
    %12 = vector.broadcast %8 : vector<1x128xf32> to vector<8x128xf32>
    %13 = arith.addf %11, %12 : vector<8x128xf32>
    %cst_14 = arith.constant 1.000000e-01 : f32
    %14 = vector.broadcast %cst_14 : f32 to vector<8x128xf32>
    %15 = arith.mulf %14, %13 : vector<8x128xf32>
    %16 = arith.maximumf %13, %15 : vector<8x128xf32>
    %17 = arith.truncf %16 : vector<8x128xf32> to vector<8x128xbf16>
    %cst_15 = arith.constant dense<0.000000e+00> : vector<8x128xf32>
    %18 = tpu.matmul %17, %5, %cst_15 {dimension_numbers = #tpu.dot_dimension_numbers<[1], [0], [0], [1], [0, 0, 1, 1], [], []>} : vector<8x128xbf16>, vector<128x128xbf16>, vector<8x128xf32> -> vector<8x128xf32>
    %19 = vector.broadcast %9 : vector<1x128xf32> to vector<8x128xf32>
    %20 = arith.addf %18, %19 : vector<8x128xf32>
    %cst_16 = arith.constant 1.000000e-01 : f32
    %21 = vector.broadcast %cst_16 : f32 to vector<8x128xf32>
    %22 = arith.mulf %21, %20 : vector<8x128xf32>
    %23 = arith.maximumf %20, %22 : vector<8x128xf32>
    %24 = arith.truncf %23 : vector<8x128xf32> to vector<8x128xbf16>
    %cst_17 = arith.constant dense<0.000000e+00> : vector<8x128xf32>
    %25 = tpu.matmul %24, %7, %cst_17 {dimension_numbers = #tpu.dot_dimension_numbers<[1], [0], [0], [1], [0, 0, 1, 1], [], []>} : vector<8x128xbf16>, vector<128x128xbf16>, vector<8x128xf32> -> vector<8x128xf32>
    %26 = vector.broadcast %10 : vector<1x128xf32> to vector<8x128xf32>
    %27 = arith.addf %25, %26 : vector<8x128xf32>
    %c0_18 = arith.constant 0 : index
    %c0_19 = arith.constant 0 : index
    %28 = vector.load %arg4[%c0_18, %c0_19] : memref<8x128xf32, #tpu.memory_space<vmem>>, vector<8x128xf32>
    tpu.vector_store %arg4[%c0_18, %c0_19], %27 {strides = array<i32>} : memref<8x128xf32, #tpu.memory_space<vmem>>, vector<8x128xf32>,
    return
  }
  func.func @transform_0(%arg0: i32) -> (i32, i32) {
    %c0_i32 = arith.constant 0 : i32
    %c0_i32_0 = arith.constant 0 : i32
    return %arg0, %c0_i32 : i32, i32
  }
  func.func @transform_1(%arg0: i32) -> (i32, i32, i32) {
    %c0_i32 = arith.constant 0 : i32
    %c0_i32_0 = arith.constant 0 : i32
    %c0_i32_1 = arith.constant 0 : i32
    %c0_i32_2 = arith.constant 0 : i32
    return %c0_i32, %c0_i32_0, %c0_i32_1 : i32, i32, i32
  }
  func.func @transform_2(%arg0: i32) -> (i32, i32) {
    %c0_i32 = arith.constant 0 : i32
    %c0_i32_0 = arith.constant 0 : i32
    %c0_i32_1 = arith.constant 0 : i32
    return %c0_i32, %c0_i32_0 : i32, i32
  }
  func.func @transform_3(%arg0: i32) -> (i32, i32) {
    %c0_i32 = arith.constant 0 : i32
    %c0_i32_0 = arith.constant 0 : i32
    return %arg0, %c0_i32 : i32, i32
  }
}

module attributes {stable_mosaic.version = 11 : i64} {
  func.func @dqn_kernel(%arg0: i32, %arg1: memref<8x16xf32, #tpu.memory_space<vmem>>, %arg2: memref<3x128x128xbf16, #tpu.memory_space<vmem>>, %arg3: memref<3x128xf32, #tpu.memory_space<vmem>>, %arg4: memref<8x128xf32, #tpu.memory_space<vmem>>) attributes {dimension_semantics = [#tpu.dimension_semantics<parallel>], iteration_bounds = array<i64: 1>, scalar_prefetch = 0 : i64, scratch_operands = 0 : i64, tpu.core_type = #tpu.core_type<tc>, window_params = [{transform_indices = @transform_0, window_bounds = array<i64: 8, 16>}, {pipeline_mode = #tpu.pipeline_mode<synchronous>, transform_indices = @transform_1, window_bounds = array<i64: 3, 128, 128>}, {pipeline_mode = #tpu.pipeline_mode<synchronous>, transform_indices = @transform_2, window_bounds = array<i64: 3, 128>}, {transform_indices = @transform_3, window_bounds = array<i64: 8, 128>}]} {
    %c0 = arith.constant 0 : index
    %c0_0 = arith.constant 0 : index
    %0 = vector.load %arg1[%c0, %c0_0] : memref<8x16xf32, #tpu.memory_space<vmem>>, vector<8x16xf32>
    %1 = arith.truncf %0 : vector<8x16xf32> to vector<8x16xbf16>
    %c0_1 = arith.constant 0 : index
    %c0_2 = arith.constant 0 : index
    %c0_3 = arith.constant 0 : index
    %2 = vector.load %arg2[%c0_1, %c0_2, %c0_3] : memref<3x128x128xbf16, #tpu.memory_space<vmem>>, vector<1x16x128xbf16>
    %3 = vector.shape_cast %2 : vector<1x16x128xbf16> to vector<16x128xbf16>
    %c1 = arith.constant 1 : index
    %c0_4 = arith.constant 0 : index
    %c0_5 = arith.constant 0 : index
    %4 = vector.load %arg2[%c1, %c0_4, %c0_5] : memref<3x128x128xbf16, #tpu.memory_space<vmem>>, vector<1x128x128xbf16>
    %5 = vector.shape_cast %4 : vector<1x128x128xbf16> to vector<128x128xbf16>
    %c2 = arith.constant 2 : index
    %c0_6 = arith.constant 0 : index
    %c0_7 = arith.constant 0 : index
    %6 = vector.load %arg2[%c2, %c0_6, %c0_7] : memref<3x128x128xbf16, #tpu.memory_space<vmem>>, vector<1x128x128xbf16>
    %7 = vector.shape_cast %6 : vector<1x128x128xbf16> to vector<128x128xbf16>
    %c0_8 = arith.constant 0 : index
    %c0_9 = arith.constant 0 : index
    %8 = vector.load %arg3[%c0_8, %c0_9] : memref<3x128xf32, #tpu.memory_space<vmem>>, vector<1x128xf32>
    %c1_10 = arith.constant 1 : index
    %c0_11 = arith.constant 0 : index
    %9 = vector.load %arg3[%c1_10, %c0_11] : memref<3x128xf32, #tpu.memory_space<vmem>>, vector<1x128xf32>
    %c2_12 = arith.constant 2 : index
    %c0_13 = arith.constant 0 : index
    %10 = vector.load %arg3[%c2_12, %c0_13] : memref<3x128xf32, #tpu.memory_space<vmem>>, vector<1x128xf32>
    %cst = arith.constant dense<0.000000e+00> : vector<8x128xf32>
    %11 = tpu.matmul %1, %3, %cst {dimension_numbers = #tpu.dot_dimension_numbers<[1], [0], [0], [1], [0, 0, 1, 1], [], []>} : vector<8x16xbf16>, vector<16x128xbf16>, vector<8x128xf32> -> vector<8x128xf32>
    %12 = vector.broadcast %8 : vector<1x128xf32> to vector<8x128xf32>
    %13 = arith.addf %11, %12 : vector<8x128xf32>
    %cst_14 = arith.constant 1.000000e-01 : f32
    %14 = vector.broadcast %cst_14 : f32 to vector<8x128xf32>
    %15 = arith.mulf %14, %13 : vector<8x128xf32>
    %16 = arith.maximumf %13, %15 : vector<8x128xf32>
    %17 = arith.truncf %16 : vector<8x128xf32> to vector<8x128xbf16>
    %cst_15 = arith.constant dense<0.000000e+00> : vector<8x128xf32>
    %18 = tpu.matmul %17, %5, %cst_15 {dimension_numbers = #tpu.dot_dimension_numbers<[1], [0], [0], [1], [0, 0, 1, 1], [], []>} : vector<8x128xbf16>, vector<128x128xbf16>, vector<8x128xf32> -> vector<8x128xf32>
    %19 = vector.broadcast %9 : vector<1x128xf32> to vector<8x128xf32>
    %20 = arith.addf %18, %19 : vector<8x128xf32>
    %cst_16 = arith.constant 1.000000e-01 : f32
    %21 = vector.broadcast %cst_16 : f32 to vector<8x128xf32>
    %22 = arith.mulf %21, %20 : vector<8x128xf32>
    %23 = arith.maximumf %20, %22 : vector<8x128xf32>
    %24 = arith.truncf %23 : vector<8x128xf32> to vector<8x128xbf16>
    %cst_17 = arith.constant dense<0.000000e+00> : vector<8x128xf32>
    %25 = tpu.matmul %24, %7, %cst_17 {dimension_numbers = #tpu.dot_dimension_numbers<[1], [0], [0], [1], [0, 0, 1, 1], [], []>} : vector<8x128xbf16>, vector<128x128xbf16>, vector<8x128xf32> -> vector<8x128xf32>
    %26 = vector.broadcast %10 : vector<1x128xf32> to vector<8x128xf32>
    %27 = arith.addf %25, %26 : vector<8x128xf32>
    %c0_18 = arith.constant 0 : index
    %c0_19 = arith.constant 0 : index
    %28 = vector.load %arg4[%c0_18, %c0_19] : memref<8x128xf32, #tpu.memory_space<vmem>>, vector<8x128xf32>
    tpu.vector_store %arg4[%c0_18, %c0_19], %27 {strides = array<i32>} : memref<8x128xf32, #tpu.memory_space<vmem>>, vector<8x128xf32>,
    return
  }
  func.func @transform_0(%arg0: i32) -> (i32, i32) {
    %c0_i32 = arith.constant 0 : i32
    %c0_i32_0 = arith.constant 0 : i32
    return %arg0, %c0_i32 : i32, i32
  }
  func.func @transform_1(%arg0: i32) -> (i32, i32, i32) {
    %c0_i32 = arith.constant 0 : i32
    %c0_i32_0 = arith.constant 0 : i32
    %c0_i32_1 = arith.constant 0 : i32
    %c0_i32_2 = arith.constant 0 : i32
    return %c0_i32, %c0_i32_0, %c0_i32_1 : i32, i32, i32
  }
  func.func @transform_2(%arg0: i32) -> (i32, i32) {
    %c0_i32 = arith.constant 0 : i32
    %c0_i32_0 = arith.constant 0 : i32
    %c0_i32_1 = arith.constant 0 : i32
    return %c0_i32, %c0_i32_0 : i32, i32
  }
  func.func @transform_3(%arg0: i32) -> (i32, i32) {
    %c0_i32 = arith.constant 0 : i32
    %c0_i32_0 = arith.constant 0 : i32
    return %arg0, %c0_i32 : i32, i32
  }
}

</mosaic_0001>

<llo_original>
// kernel: tpu_custom_call.1
$region0: #{tpu_custom_call.1}
  #allocation0 [shape = 'u32[]', space=smem, size = 0x4, offset = 0x4, fixed_abs, tag = 'smem constant byte address 0x4 - core index']
  #allocation1 [shape = 'u32[144,128]{1,0:T(1,128)}', space=vmem, size = 0x12000, scoped, tag = 'internal scratch']
  %s0 = inlined_call_operand.hbm [shape: f32[8,16], index: 0, kind: input, shape index: {}]
  %s1 = inlined_call_operand.hbm [shape: bf16[3,128,128], index: 1, kind: input, shape index: {}]
  %s2 = inlined_call_operand.vmem [shape: f32[3,128], index: 2, kind: input, shape index: {}]
  %s3 = inlined_call_operand.hbm [shape: f32[8,128], index: 3, kind: output, shape index: {}]
  %s4 = sld [smem:[#allocation0]]
  $region30: #{tpu_custom_call.1} parent=0
    _
  %s6 = ssub.s32 1, %s4
  %s7 = scalar_select 0, %s6, %s4
  $region1: #{tpu_custom_call.1} parent=0
    #allocation2 [shape = 'u8[4096]{0}', space=vmem, size = 0x1000, scoped, tag = 'input window, operand 0, single buffered']
    #allocation3 [shape = 's32[1]{0}', space=sflag, size = 0x4, scoped, tag = 'scoped memory for tpu_custom_call.1']
    #allocation4 [shape = 's32[1]{0}', space=sflag, size = 0x4, scoped, tag = 'scoped memory for tpu_custom_call.1']
    #allocation5 [shape = 'u8[98304]{0}', space=vmem, size = 0x18000, scoped, tag = 'input window, operand 1, single buffered']
    #allocation6 [shape = 's32[1]{0}', space=sflag, size = 0x4, scoped, tag = 'scoped memory for tpu_custom_call.1']
    #allocation7 [shape = 'u8[4096]{0}', space=vmem, size = 0x1000, scoped, tag = 'output window, operand 0, single buffered']
    %8 = vsyncpa [#allocation3], 0
    %9 = vsyncpa [#allocation6], 0
    %10 = vsyncpa [#allocation4], 0
    // Predicated region
    $region2: #{tpu_custom_call.1} parent=1 // pred_check
      _
    $region3: #{tpu_custom_call.1} parent=1 // pred_check_branch
      %12 = sbr.rel (0) target = $region5
    $region4: #{tpu_custom_call.1} parent=1 // pred_region
      %s14 = ssub.s32 128, 128
      %15 = vsyncadd [#allocation3], %s14
      %s17 = sshll.u32 [#allocation2], 4
      %s18 = int_to_ptr.vmem [resolvable:$true] %s17
      %20 = dma.hbm_to_vmem [thread:$0]  %s0, 128, %s18, [#allocation3]
    $region5: #{tpu_custom_call.1} parent=1 // pred_fallthru
      _
    // Predicated region
    $region6: #{tpu_custom_call.1} parent=1 // pred_check
      _
    $region7: #{tpu_custom_call.1} parent=1 // pred_check_branch
      %22 = sbr.rel (0) target = $region9
    $region8: #{tpu_custom_call.1} parent=1 // pred_region
      %s24 = ssub.s32 3072, 3072
      %25 = vsyncadd [#allocation6], %s24
      %s26 = sshll.u32 [#allocation5], 4
      %s27 = int_to_ptr.vmem [resolvable:$true] %s26
      %32 = dma.hbm_to_vmem [thread:$0]  %s1, 3072, %s27, [#allocation6], 64, 64, 4
    $region9: #{tpu_custom_call.1} parent=1 // pred_fallthru
      _
    // Predicated region
    $region10: #{tpu_custom_call.1} parent=1 // pred_check
      _
    $region11: #{tpu_custom_call.1} parent=1 // pred_check_branch
      %34 = sbr.rel (0) target = $region13
    $region12: #{tpu_custom_call.1} parent=1 // pred_region
      _
    $region13: #{tpu_custom_call.1} parent=1 // pred_fallthru
      _
    // Predicated region
    $region14: #{tpu_custom_call.1} parent=1 // pred_check
      _
    $region15: #{tpu_custom_call.1} parent=1 // pred_check_branch
      %36 = sbr.rel (0) target = $region17
    $region16: #{tpu_custom_call.1} parent=1 // pred_region
      %37 = dma.done [#allocation3], 128
    $region17: #{tpu_custom_call.1} parent=1 // pred_fallthru
      _
    // Predicated region
    $region18: #{tpu_custom_call.1} parent=1 // pred_check
      _
    $region19: #{tpu_custom_call.1} parent=1 // pred_check_branch
      %39 = sbr.rel (0) target = $region21
    $region20: #{tpu_custom_call.1} parent=1 // pred_region
      %40 = dma.done [#allocation6], 3072
    $region21: #{tpu_custom_call.1} parent=1 // pred_fallthru
      _
    %v42 = vld [vmem:[#allocation2] sm:$0xff]
    %v43 = vpack.c.bf16 %v42, %v42
    %v44 = vld [vmem:[#allocation5] sm:$0xf]
    %v45 = vld [vmem:[#allocation5 + $0x4] sm:$0xf]
    %s46 = scalar_lea.vmem [#allocation5], 64
    %v47 = vld [vmem:[%s46] sm:$0xf]
    %v48 = vld [vmem:[%s46 + $0x4] sm:$0xf]
    %v49 = vld [vmem:[%s46 + $0x8] sm:$0xf]
    %v50 = vld [vmem:[%s46 + $0xc] sm:$0xf]
    %v51 = vld [vmem:[%s46 + $0x10] sm:$0xf]
    %v52 = vld [vmem:[%s46 + $0x14] sm:$0xf]
    %v53 = vld [vmem:[%s46 + $0x18] sm:$0xf]
    %v54 = vld [vmem:[%s46 + $0x1c] sm:$0xf]
    %v55 = vld [vmem:[%s46 + $0x20] sm:$0xf]
    %v56 = vld [vmem:[%s46 + $0x24] sm:$0xf]
    %v57 = vld [vmem:[%s46 + $0x28] sm:$0xf]
    %v58 = vld [vmem:[%s46 + $0x2c] sm:$0xf]
    %v59 = vld [vmem:[%s46 + $0x30] sm:$0xf]
    %v60 = vld [vmem:[%s46 + $0x34] sm:$0xf]
    %v61 = vld [vmem:[%s46 + $0x38] sm:$0xf]
    %v62 = vld [vmem:[%s46 + $0x3c] sm:$0xf]
    %s63 = scalar_lea.vmem [#allocation5], 128
    %v64 = vld [vmem:[%s63] sm:$0xf]
    %v65 = vld [vmem:[%s63 + $0x4] sm:$0xf]
    %v66 = vld [vmem:[%s63 + $0x8] sm:$0xf]
    %v67 = vld [vmem:[%s63 + $0xc] sm:$0xf]
    %v68 = vld [vmem:[%s63 + $0x10] sm:$0xf]
    %v69 = vld [vmem:[%s63 + $0x14] sm:$0xf]
    %v70 = vld [vmem:[%s63 + $0x18] sm:$0xf]
    %v71 = vld [vmem:[%s63 + $0x1c] sm:$0xf]
    %v72 = vld [vmem:[%s63 + $0x20] sm:$0xf]
    %v73 = vld [vmem:[%s63 + $0x24] sm:$0xf]
    %v74 = vld [vmem:[%s63 + $0x28] sm:$0xf]
    %v75 = vld [vmem:[%s63 + $0x2c] sm:$0xf]
    %v76 = vld [vmem:[%s63 + $0x30] sm:$0xf]
    %v77 = vld [vmem:[%s63 + $0x34] sm:$0xf]
    %v78 = vld [vmem:[%s63 + $0x38] sm:$0xf]
    %v79 = vld [vmem:[%s63 + $0x3c] sm:$0xf]
    %v80 = vld [vmem:[%s2] sm:$0x1]
    %v81 = vld [vmem:[%s2 + $0x1] sm:$0x1]
    %v82 = vld [vmem:[%s2 + $0x2] sm:$0x1]
    %v83 = vlaneseq
    %v84 = vshrl.u32 %v83, 7
    %v85 = vsub.s32 0, %v84
    %v86 = vrot.slane %v80, %v85
    %v89 = vunpack.c.l.b16 %v44
    %v90 = vunpack.c.l.b16 %v45
    %v91 = vpack.c.b16 %v90, %v89
    %vm93 = vcmask 130048
    %v95 = vsel %vm93, %v43, 0
    %97 = vmatprep.subr.bf16.mxu0 0
    %98 = vmatpush1.bf16.msra.mxu0 %v91
    %99 = vmatprep.subr.bf16.mxu0 0
    %100 = vmatpush1.bf16.msra.mxu0 0
    %101 = vmatprep.subr.bf16.mxu0 0
    %102 = vmatpush1.bf16.msra.mxu0 0
    %103 = vmatprep.subr.bf16.mxu0 0
    %104 = vmatpush1.bf16.msra.mxu0 0
    %105 = vmatprep.subr.bf16.mxu0 0
    %106 = vmatpush1.bf16.msra.mxu0 0
    %107 = vmatprep.subr.bf16.mxu0 0
    %108 = vmatpush1.bf16.msra.mxu0 0
    %109 = vmatprep.subr.bf16.mxu0 0
    %110 = vmatpush1.bf16.msra.mxu0 0
    %111 = vmatprep.subr.bf16.mxu0 0
    %112 = vmatpush1.bf16.msra.mxu0 0
    %113 = vmatprep.subr.bf16.mxu0 0
    %114 = vmatpush1.bf16.msra.mxu0 0
    %115 = vmatprep.subr.bf16.mxu0 0
    %116 = vmatpush1.bf16.msra.mxu0 0
    %117 = vmatprep.subr.bf16.mxu0 0
    %118 = vmatpush1.bf16.msra.mxu0 0
    %119 = vmatprep.subr.bf16.mxu0 0
    %120 = vmatpush1.bf16.msra.mxu0 0
    %121 = vmatprep.subr.bf16.mxu0 0
    %122 = vmatpush1.bf16.msra.mxu0 0
    %123 = vmatprep.subr.bf16.mxu0 0
    %124 = vmatpush1.bf16.msra.mxu0 0
    %125 = vmatprep.subr.bf16.mxu0 0
    %126 = vmatpush1.bf16.msra.mxu0 0
    %127 = vmatprep.subr.bf16.mxu0 0
    %128 = vmatpush1.bf16.msra.mxu0 0
    %129 = vmatprep.mubr.bf16.mxu0 0
    %130 = vmatmul.mubr.bf16.gmra.mrb[0].mxu0 %v95
    %v131 = vpop.f32.mrb[0].mxu0
    %v132 = vadd.f32 %v86, %v131
    %v133 = vpop.f32.mrb[0].mxu0
    %v134 = vpop.f32.mrb[0].mxu0
    %v135 = vpop.f32.mrb[0].mxu0
    %136 = vdwg.mxu0
    %v137 = vmul.f32 %v132, 0.1
    %v138 = vmax.f32 %v132, %v137
    %v139 = vpack.c.bf16 %v138, %v138
    %v140 = vlaneseq
    %v141 = vshrl.u32 %v140, 7
    %v142 = vsub.s32 0, %v141
    %v143 = vrot.slane %v81, %v142
    %v160 = vunpack.c.l.b16 %v47
    %v161 = vunpack.c.l.b16 %v48
    %v162 = vunpack.c.l.b16 %v49
    %v163 = vunpack.c.l.b16 %v50
    %v164 = vunpack.c.l.b16 %v51
    %v165 = vunpack.c.l.b16 %v52
    %v166 = vunpack.c.l.b16 %v53
    %v167 = vunpack.c.l.b16 %v54
    %v168 = vunpack.c.l.b16 %v55
    %v169 = vunpack.c.l.b16 %v56
    %v170 = vunpack.c.l.b16 %v57
    %v171 = vunpack.c.l.b16 %v58
    %v172 = vunpack.c.l.b16 %v59
    %v173 = vunpack.c.l.b16 %v60
    %v174 = vunpack.c.l.b16 %v61
    %v175 = vunpack.c.l.b16 %v62
    %v176 = vpack.c.b16 %v161, %v160
    %v177 = vpack.c.b16 %v163, %v162
    %v178 = vpack.c.b16 %v165, %v164
    %v179 = vpack.c.b16 %v167, %v166
    %v180 = vpack.c.b16 %v169, %v168
    %v181 = vpack.c.b16 %v171, %v170
    %v182 = vpack.c.b16 %v173, %v172
    %v183 = vpack.c.b16 %v175, %v174
    %192 = vmatprep.subr.bf16.mxu0 0
    %193 = vmatpush1.bf16.msra.mxu0 %v176
    %194 = vmatprep.subr.bf16.mxu0 0
    %195 = vmatpush1.bf16.msra.mxu0 %v177
    %196 = vmatprep.subr.bf16.mxu0 0
    %197 = vmatpush1.bf16.msra.mxu0 %v178
    %198 = vmatprep.subr.bf16.mxu0 0
    %199 = vmatpush1.bf16.msra.mxu0 %v179
    %200 = vmatprep.subr.bf16.mxu0 0
    %201 = vmatpush1.bf16.msra.mxu0 %v180
    %202 = vmatprep.subr.bf16.mxu0 0
    %203 = vmatpush1.bf16.msra.mxu0 %v181
    %204 = vmatprep.subr.bf16.mxu0 0
    %205 = vmatpush1.bf16.msra.mxu0 %v182
    %206 = vmatprep.subr.bf16.mxu0 0
    %207 = vmatpush1.bf16.msra.mxu0 %v183
    %208 = vmatprep.subr.bf16.mxu0 0
    %209 = vmatpush1.bf16.msra.mxu0 0
    %210 = vmatprep.subr.bf16.mxu0 0
    %211 = vmatpush1.bf16.msra.mxu0 0
    %212 = vmatprep.subr.bf16.mxu0 0
    %213 = vmatpush1.bf16.msra.mxu0 0
    %214 = vmatprep.subr.bf16.mxu0 0
    %215 = vmatpush1.bf16.msra.mxu0 0
    %216 = vmatprep.subr.bf16.mxu0 0
    %217 = vmatpush1.bf16.msra.mxu0 0
    %218 = vmatprep.subr.bf16.mxu0 0
    %219 = vmatpush1.bf16.msra.mxu0 0
    %220 = vmatprep.subr.bf16.mxu0 0
    %221 = vmatpush1.bf16.msra.mxu0 0
    %222 = vmatprep.subr.bf16.mxu0 0
    %223 = vmatpush1.bf16.msra.mxu0 0
    %224 = vmatprep.mubr.bf16.mxu0 0
    %225 = vmatmul.mubr.bf16.gmra.mrb[0].mxu0 %v139
    %v226 = vpop.f32.mrb[0].mxu0
    %v227 = vadd.f32 %v143, %v226
    %v228 = vpop.f32.mrb[0].mxu0
    %v229 = vpop.f32.mrb[0].mxu0
    %v230 = vpop.f32.mrb[0].mxu0
    %231 = vdwg.mxu0
    %v232 = vmul.f32 %v227, 0.1
    %v233 = vmax.f32 %v227, %v232
    %v234 = vpack.c.bf16 %v233, %v233
    %v235 = vlaneseq
    %v236 = vshrl.u32 %v235, 7
    %v237 = vsub.s32 0, %v236
    %v238 = vrot.slane %v82, %v237
    %v255 = vunpack.c.l.b16 %v64
    %v256 = vunpack.c.l.b16 %v65
    %v257 = vunpack.c.l.b16 %v66
    %v258 = vunpack.c.l.b16 %v67
    %v259 = vunpack.c.l.b16 %v68
    %v260 = vunpack.c.l.b16 %v69
    %v261 = vunpack.c.l.b16 %v70
    %v262 = vunpack.c.l.b16 %v71
    %v263 = vunpack.c.l.b16 %v72
    %v264 = vunpack.c.l.b16 %v73
    %v265 = vunpack.c.l.b16 %v74
    %v266 = vunpack.c.l.b16 %v75
    %v267 = vunpack.c.l.b16 %v76
    %v268 = vunpack.c.l.b16 %v77
    %v269 = vunpack.c.l.b16 %v78
    %v270 = vunpack.c.l.b16 %v79
    %v271 = vpack.c.b16 %v256, %v255
    %v272 = vpack.c.b16 %v258, %v257
    %v273 = vpack.c.b16 %v260, %v259
    %v274 = vpack.c.b16 %v262, %v261
    %v275 = vpack.c.b16 %v264, %v263
    %v276 = vpack.c.b16 %v266, %v265
    %v277 = vpack.c.b16 %v268, %v267
    %v278 = vpack.c.b16 %v270, %v269
    %287 = vmatprep.subr.bf16.mxu0 0
    %288 = vmatpush1.bf16.msra.mxu0 %v271
    %289 = vmatprep.subr.bf16.mxu0 0
    %290 = vmatpush1.bf16.msra.mxu0 %v272
    %291 = vmatprep.subr.bf16.mxu0 0
    %292 = vmatpush1.bf16.msra.mxu0 %v273
    %293 = vmatprep.subr.bf16.mxu0 0
    %294 = vmatpush1.bf16.msra.mxu0 %v274
    %295 = vmatprep.subr.bf16.mxu0 0
    %296 = vmatpush1.bf16.msra.mxu0 %v275
    %297 = vmatprep.subr.bf16.mxu0 0
    %298 = vmatpush1.bf16.msra.mxu0 %v276
    %299 = vmatprep.subr.bf16.mxu0 0
    %300 = vmatpush1.bf16.msra.mxu0 %v277
    %301 = vmatprep.subr.bf16.mxu0 0
    %302 = vmatpush1.bf16.msra.mxu0 %v278
    %303 = vmatprep.subr.bf16.mxu0 0
    %304 = vmatpush1.bf16.msra.mxu0 0
    %305 = vmatprep.subr.bf16.mxu0 0
    %306 = vmatpush1.bf16.msra.mxu0 0
    %307 = vmatprep.subr.bf16.mxu0 0
    %308 = vmatpush1.bf16.msra.mxu0 0
    %309 = vmatprep.subr.bf16.mxu0 0
    %310 = vmatpush1.bf16.msra.mxu0 0
    %311 = vmatprep.subr.bf16.mxu0 0
    %312 = vmatpush1.bf16.msra.mxu0 0
    %313 = vmatprep.subr.bf16.mxu0 0
    %314 = vmatpush1.bf16.msra.mxu0 0
    %315 = vmatprep.subr.bf16.mxu0 0
    %316 = vmatpush1.bf16.msra.mxu0 0
    %317 = vmatprep.subr.bf16.mxu0 0
    %318 = vmatpush1.bf16.msra.mxu0 0
    %319 = vmatprep.mubr.bf16.mxu0 0
    %320 = vmatmul.mubr.bf16.gmra.mrb[0].mxu0 %v234
    %v321 = vpop.f32.mrb[0].mxu0
    %v322 = vadd.f32 %v238, %v321
    %v323 = vpop.f32.mrb[0].mxu0
    %v324 = vpop.f32.mrb[0].mxu0
    %v325 = vpop.f32.mrb[0].mxu0
    %326 = vdwg.mxu0
    %327 = vst [vmem:[#allocation7] sm:$0xff] %v322
    // Predicated region
    $region22: #{tpu_custom_call.1} parent=1 // pred_check
      _
    $region23: #{tpu_custom_call.1} parent=1 // pred_check_branch
      %329 = sbr.rel (0) target = $region25
    $region24: #{tpu_custom_call.1} parent=1 // pred_region
      %s331 = ssub.s32 128, 128
      %332 = vsyncadd [#allocation4], %s331
      %s334 = sshll.u32 [#allocation7], 4
      %s335 = int_to_ptr.vmem [resolvable:$true] %s334
      %337 = dma.vmem_to_hbm [thread:$0]  %s335, 128, %s3, [#allocation4]
    $region25: #{tpu_custom_call.1} parent=1 // pred_fallthru
      _
    // Predicated region
    $region26: #{tpu_custom_call.1} parent=1 // pred_check
      _
    $region27: #{tpu_custom_call.1} parent=1 // pred_check_branch
      %339 = sbr.rel (0) target = $region29
    $region28: #{tpu_custom_call.1} parent=1 // pred_region
      %340 = dma.done [#allocation4], 128
    $region29: #{tpu_custom_call.1} parent=1 // pred_fallthru
      _
    %341 = vsyncpa [#allocation3], 1
    %342 = vsyncpa [#allocation6], 1
    %343 = vsyncpa [#allocation4], 1

// kernel: tpu_custom_call.1
$region0: #{tpu_custom_call.1}
  #allocation0 [shape = 'u32[]', space=smem, size = 0x4, offset = 0x4, fixed_abs, tag = 'smem constant byte address 0x4 - core index']
  #allocation1 [shape = 'u32[144,128]{1,0:T(1,128)}', space=vmem, size = 0x12000, scoped, tag = 'internal scratch']
  %s0 = inlined_call_operand.hbm [shape: f32[8,16], index: 0, kind: input, shape index: {}]
  %s1 = inlined_call_operand.hbm [shape: bf16[3,128,128], index: 1, kind: input, shape index: {}]
  %s2 = inlined_call_operand.vmem [shape: f32[3,128], index: 2, kind: input, shape index: {}]
  %s3 = inlined_call_operand.hbm [shape: f32[8,128], index: 3, kind: output, shape index: {}]
  %s4 = sld [smem:[#allocation0]]
  $region30: #{tpu_custom_call.1} parent=0
    _
  %s6 = ssub.s32 1, %s4
  %s7 = scalar_select 0, %s6, %s4
  $region1: #{tpu_custom_call.1} parent=0
    #allocation2 [shape = 'u8[4096]{0}', space=vmem, size = 0x1000, scoped, tag = 'input window, operand 0, single buffered']
    #allocation3 [shape = 's32[1]{0}', space=sflag, size = 0x4, scoped, tag = 'scoped memory for tpu_custom_call.1']
    #allocation4 [shape = 's32[1]{0}', space=sflag, size = 0x4, scoped, tag = 'scoped memory for tpu_custom_call.1']
    #allocation5 [shape = 'u8[98304]{0}', space=vmem, size = 0x18000, scoped, tag = 'input window, operand 1, single buffered']
    #allocation6 [shape = 's32[1]{0}', space=sflag, size = 0x4, scoped, tag = 'scoped memory for tpu_custom_call.1']
    #allocation7 [shape = 'u8[4096]{0}', space=vmem, size = 0x1000, scoped, tag = 'output window, operand 0, single buffered']
    %8 = vsyncpa [#allocation3], 0
    %9 = vsyncpa [#allocation6], 0
    %10 = vsyncpa [#allocation4], 0
    // Predicated region
    $region2: #{tpu_custom_call.1} parent=1 // pred_check
      _
    $region3: #{tpu_custom_call.1} parent=1 // pred_check_branch
      %12 = sbr.rel (0) target = $region5
    $region4: #{tpu_custom_call.1} parent=1 // pred_region
      %s14 = ssub.s32 128, 128
      %15 = vsyncadd [#allocation3], %s14
      %s17 = sshll.u32 [#allocation2], 4
      %s18 = int_to_ptr.vmem [resolvable:$true] %s17
      %20 = dma.hbm_to_vmem [thread:$0]  %s0, 128, %s18, [#allocation3]
    $region5: #{tpu_custom_call.1} parent=1 // pred_fallthru
      _
    // Predicated region
    $region6: #{tpu_custom_call.1} parent=1 // pred_check
      _
    $region7: #{tpu_custom_call.1} parent=1 // pred_check_branch
      %22 = sbr.rel (0) target = $region9
    $region8: #{tpu_custom_call.1} parent=1 // pred_region
      %s24 = ssub.s32 3072, 3072
      %25 = vsyncadd [#allocation6], %s24
      %s26 = sshll.u32 [#allocation5], 4
      %s27 = int_to_ptr.vmem [resolvable:$true] %s26
      %32 = dma.hbm_to_vmem [thread:$0]  %s1, 3072, %s27, [#allocation6], 64, 64, 4
    $region9: #{tpu_custom_call.1} parent=1 // pred_fallthru
      _
    // Predicated region
    $region10: #{tpu_custom_call.1} parent=1 // pred_check
      _
    $region11: #{tpu_custom_call.1} parent=1 // pred_check_branch
      %34 = sbr.rel (0) target = $region13
    $region12: #{tpu_custom_call.1} parent=1 // pred_region
      _
    $region13: #{tpu_custom_call.1} parent=1 // pred_fallthru
      _
    // Predicated region
    $region14: #{tpu_custom_call.1} parent=1 // pred_check
      _
    $region15: #{tpu_custom_call.1} parent=1 // pred_check_branch
      %36 = sbr.rel (0) target = $region17
    $region16: #{tpu_custom_call.1} parent=1 // pred_region
      %37 = dma.done [#allocation3], 128
    $region17: #{tpu_custom_call.1} parent=1 // pred_fallthru
      _
    // Predicated region
    $region18: #{tpu_custom_call.1} parent=1 // pred_check
      _
    $region19: #{tpu_custom_call.1} parent=1 // pred_check_branch
      %39 = sbr.rel (0) target = $region21
    $region20: #{tpu_custom_call.1} parent=1 // pred_region
      %40 = dma.done [#allocation6], 3072
    $region21: #{tpu_custom_call.1} parent=1 // pred_fallthru
      _
    %v42 = vld [vmem:[#allocation2] sm:$0xff]
    %v43 = vpack.c.bf16 %v42, %v42
    %v44 = vld [vmem:[#allocation5] sm:$0xf]
    %v45 = vld [vmem:[#allocation5 + $0x4] sm:$0xf]
    %s46 = scalar_lea.vmem [#allocation5], 64
    %v47 = vld [vmem:[%s46] sm:$0xf]
    %v48 = vld [vmem:[%s46 + $0x4] sm:$0xf]
    %v49 = vld [vmem:[%s46 + $0x8] sm:$0xf]
    %v50 = vld [vmem:[%s46 + $0xc] sm:$0xf]
    %v51 = vld [vmem:[%s46 + $0x10] sm:$0xf]
    %v52 = vld [vmem:[%s46 + $0x14] sm:$0xf]
    %v53 = vld [vmem:[%s46 + $0x18] sm:$0xf]
    %v54 = vld [vmem:[%s46 + $0x1c] sm:$0xf]
    %v55 = vld [vmem:[%s46 + $0x20] sm:$0xf]
    %v56 = vld [vmem:[%s46 + $0x24] sm:$0xf]
    %v57 = vld [vmem:[%s46 + $0x28] sm:$0xf]
    %v58 = vld [vmem:[%s46 + $0x2c] sm:$0xf]
    %v59 = vld [vmem:[%s46 + $0x30] sm:$0xf]
    %v60 = vld [vmem:[%s46 + $0x34] sm:$0xf]
    %v61 = vld [vmem:[%s46 + $0x38] sm:$0xf]
    %v62 = vld [vmem:[%s46 + $0x3c] sm:$0xf]
    %s63 = scalar_lea.vmem [#allocation5], 128
    %v64 = vld [vmem:[%s63] sm:$0xf]
    %v65 = vld [vmem:[%s63 + $0x4] sm:$0xf]
    %v66 = vld [vmem:[%s63 + $0x8] sm:$0xf]
    %v67 = vld [vmem:[%s63 + $0xc] sm:$0xf]
    %v68 = vld [vmem:[%s63 + $0x10] sm:$0xf]
    %v69 = vld [vmem:[%s63 + $0x14] sm:$0xf]
    %v70 = vld [vmem:[%s63 + $0x18] sm:$0xf]
    %v71 = vld [vmem:[%s63 + $0x1c] sm:$0xf]
    %v72 = vld [vmem:[%s63 + $0x20] sm:$0xf]
    %v73 = vld [vmem:[%s63 + $0x24] sm:$0xf]
    %v74 = vld [vmem:[%s63 + $0x28] sm:$0xf]
    %v75 = vld [vmem:[%s63 + $0x2c] sm:$0xf]
    %v76 = vld [vmem:[%s63 + $0x30] sm:$0xf]
    %v77 = vld [vmem:[%s63 + $0x34] sm:$0xf]
    %v78 = vld [vmem:[%s63 + $0x38] sm:$0xf]
    %v79 = vld [vmem:[%s63 + $0x3c] sm:$0xf]
    %v80 = vld [vmem:[%s2] sm:$0x1]
    %v81 = vld [vmem:[%s2 + $0x1] sm:$0x1]
    %v82 = vld [vmem:[%s2 + $0x2] sm:$0x1]
    %v83 = vlaneseq
    %v84 = vshrl.u32 %v83, 7
    %v85 = vsub.s32 0, %v84
    %v86 = vrot.slane %v80, %v85
    %v89 = vunpack.c.l.b16 %v44
    %v90 = vunpack.c.l.b16 %v45
    %v91 = vpack.c.b16 %v90, %v89
    %vm93 = vcmask 130048
    %v95 = vsel %vm93, %v43, 0
    %97 = vmatprep.subr.bf16.mxu0 0
    %98 = vmatpush1.bf16.msra.mxu0 %v91
    %99 = vmatprep.subr.bf16.mxu0 0
    %100 = vmatpush1.bf16.msra.mxu0 0
    %101 = vmatprep.subr.bf16.mxu0 0
    %102 = vmatpush1.bf16.msra.mxu0 0
    %103 = vmatprep.subr.bf16.mxu0 0
    %104 = vmatpush1.bf16.msra.mxu0 0
    %105 = vmatprep.subr.bf16.mxu0 0
    %106 = vmatpush1.bf16.msra.mxu0 0
    %107 = vmatprep.subr.bf16.mxu0 0
    %108 = vmatpush1.bf16.msra.mxu0 0
    %109 = vmatprep.subr.bf16.mxu0 0
    %110 = vmatpush1.bf16.msra.mxu0 0
    %111 = vmatprep.subr.bf16.mxu0 0
    %112 = vmatpush1.bf16.msra.mxu0 0
    %113 = vmatprep.subr.bf16.mxu0 0
    %114 = vmatpush1.bf16.msra.mxu0 0
    %115 = vmatprep.subr.bf16.mxu0 0
    %116 = vmatpush1.bf16.msra.mxu0 0
    %117 = vmatprep.subr.bf16.mxu0 0
    %118 = vmatpush1.bf16.msra.mxu0 0
    %119 = vmatprep.subr.bf16.mxu0 0
    %120 = vmatpush1.bf16.msra.mxu0 0
    %121 = vmatprep.subr.bf16.mxu0 0
    %122 = vmatpush1.bf16.msra.mxu0 0
    %123 = vmatprep.subr.bf16.mxu0 0
    %124 = vmatpush1.bf16.msra.mxu0 0
    %125 = vmatprep.subr.bf16.mxu0 0
    %126 = vmatpush1.bf16.msra.mxu0 0
    %127 = vmatprep.subr.bf16.mxu0 0
    %128 = vmatpush1.bf16.msra.mxu0 0
    %129 = vmatprep.mubr.bf16.mxu0 0
    %130 = vmatmul.mubr.bf16.gmra.mrb[0].mxu0 %v95
    %v131 = vpop.f32.mrb[0].mxu0
    %v132 = vadd.f32 %v86, %v131
    %v133 = vpop.f32.mrb[0].mxu0
    %v134 = vpop.f32.mrb[0].mxu0
    %v135 = vpop.f32.mrb[0].mxu0
    %136 = vdwg.mxu0
    %v137 = vmul.f32 %v132, 0.1
    %v138 = vmax.f32 %v132, %v137
    %v139 = vpack.c.bf16 %v138, %v138
    %v140 = vlaneseq
    %v141 = vshrl.u32 %v140, 7
    %v142 = vsub.s32 0, %v141
    %v143 = vrot.slane %v81, %v142
    %v160 = vunpack.c.l.b16 %v47
    %v161 = vunpack.c.l.b16 %v48
    %v162 = vunpack.c.l.b16 %v49
    %v163 = vunpack.c.l.b16 %v50
    %v164 = vunpack.c.l.b16 %v51
    %v165 = vunpack.c.l.b16 %v52
    %v166 = vunpack.c.l.b16 %v53
    %v167 = vunpack.c.l.b16 %v54
    %v168 = vunpack.c.l.b16 %v55
    %v169 = vunpack.c.l.b16 %v56
    %v170 = vunpack.c.l.b16 %v57
    %v171 = vunpack.c.l.b16 %v58
    %v172 = vunpack.c.l.b16 %v59
    %v173 = vunpack.c.l.b16 %v60
    %v174 = vunpack.c.l.b16 %v61
    %v175 = vunpack.c.l.b16 %v62
    %v176 = vpack.c.b16 %v161, %v160
    %v177 = vpack.c.b16 %v163, %v162
    %v178 = vpack.c.b16 %v165, %v164
    %v179 = vpack.c.b16 %v167, %v166
    %v180 = vpack.c.b16 %v169, %v168
    %v181 = vpack.c.b16 %v171, %v170
    %v182 = vpack.c.b16 %v173, %v172
    %v183 = vpack.c.b16 %v175, %v174
    %192 = vmatprep.subr.bf16.mxu0 0
    %193 = vmatpush1.bf16.msra.mxu0 %v176
    %194 = vmatprep.subr.bf16.mxu0 0
    %195 = vmatpush1.bf16.msra.mxu0 %v177
    %196 = vmatprep.subr.bf16.mxu0 0
    %197 = vmatpush1.bf16.msra.mxu0 %v178
    %198 = vmatprep.subr.bf16.mxu0 0
    %199 = vmatpush1.bf16.msra.mxu0 %v179
    %200 = vmatprep.subr.bf16.mxu0 0
    %201 = vmatpush1.bf16.msra.mxu0 %v180
    %202 = vmatprep.subr.bf16.mxu0 0
    %203 = vmatpush1.bf16.msra.mxu0 %v181
    %204 = vmatprep.subr.bf16.mxu0 0
    %205 = vmatpush1.bf16.msra.mxu0 %v182
    %206 = vmatprep.subr.bf16.mxu0 0
    %207 = vmatpush1.bf16.msra.mxu0 %v183
    %208 = vmatprep.subr.bf16.mxu0 0
    %209 = vmatpush1.bf16.msra.mxu0 0
    %210 = vmatprep.subr.bf16.mxu0 0
    %211 = vmatpush1.bf16.msra.mxu0 0
    %212 = vmatprep.subr.bf16.mxu0 0
    %213 = vmatpush1.bf16.msra.mxu0 0
    %214 = vmatprep.subr.bf16.mxu0 0
    %215 = vmatpush1.bf16.msra.mxu0 0
    %216 = vmatprep.subr.bf16.mxu0 0
    %217 = vmatpush1.bf16.msra.mxu0 0
    %218 = vmatprep.subr.bf16.mxu0 0
    %219 = vmatpush1.bf16.msra.mxu0 0
    %220 = vmatprep.subr.bf16.mxu0 0
    %221 = vmatpush1.bf16.msra.mxu0 0
    %222 = vmatprep.subr.bf16.mxu0 0
    %223 = vmatpush1.bf16.msra.mxu0 0
    %224 = vmatprep.mubr.bf16.mxu0 0
    %225 = vmatmul.mubr.bf16.gmra.mrb[0].mxu0 %v139
    %v226 = vpop.f32.mrb[0].mxu0
    %v227 = vadd.f32 %v143, %v226
    %v228 = vpop.f32.mrb[0].mxu0
    %v229 = vpop.f32.mrb[0].mxu0
    %v230 = vpop.f32.mrb[0].mxu0
    %231 = vdwg.mxu0
    %v232 = vmul.f32 %v227, 0.1
    %v233 = vmax.f32 %v227, %v232
    %v234 = vpack.c.bf16 %v233, %v233
    %v235 = vlaneseq
    %v236 = vshrl.u32 %v235, 7
    %v237 = vsub.s32 0, %v236
    %v238 = vrot.slane %v82, %v237
    %v255 = vunpack.c.l.b16 %v64
    %v256 = vunpack.c.l.b16 %v65
    %v257 = vunpack.c.l.b16 %v66
    %v258 = vunpack.c.l.b16 %v67
    %v259 = vunpack.c.l.b16 %v68
    %v260 = vunpack.c.l.b16 %v69
    %v261 = vunpack.c.l.b16 %v70
    %v262 = vunpack.c.l.b16 %v71
    %v263 = vunpack.c.l.b16 %v72
    %v264 = vunpack.c.l.b16 %v73
    %v265 = vunpack.c.l.b16 %v74
    %v266 = vunpack.c.l.b16 %v75
    %v267 = vunpack.c.l.b16 %v76
    %v268 = vunpack.c.l.b16 %v77
    %v269 = vunpack.c.l.b16 %v78
    %v270 = vunpack.c.l.b16 %v79
    %v271 = vpack.c.b16 %v256, %v255
    %v272 = vpack.c.b16 %v258, %v257
    %v273 = vpack.c.b16 %v260, %v259
    %v274 = vpack.c.b16 %v262, %v261
    %v275 = vpack.c.b16 %v264, %v263
    %v276 = vpack.c.b16 %v266, %v265
    %v277 = vpack.c.b16 %v268, %v267
    %v278 = vpack.c.b16 %v270, %v269
    %287 = vmatprep.subr.bf16.mxu0 0
    %288 = vmatpush1.bf16.msra.mxu0 %v271
    %289 = vmatprep.subr.bf16.mxu0 0
    %290 = vmatpush1.bf16.msra.mxu0 %v272
    %291 = vmatprep.subr.bf16.mxu0 0
    %292 = vmatpush1.bf16.msra.mxu0 %v273
    %293 = vmatprep.subr.bf16.mxu0 0
    %294 = vmatpush1.bf16.msra.mxu0 %v274
    %295 = vmatprep.subr.bf16.mxu0 0
    %296 = vmatpush1.bf16.msra.mxu0 %v275
    %297 = vmatprep.subr.bf16.mxu0 0
    %298 = vmatpush1.bf16.msra.mxu0 %v276
    %299 = vmatprep.subr.bf16.mxu0 0
    %300 = vmatpush1.bf16.msra.mxu0 %v277
    %301 = vmatprep.subr.bf16.mxu0 0
    %302 = vmatpush1.bf16.msra.mxu0 %v278
    %303 = vmatprep.subr.bf16.mxu0 0
    %304 = vmatpush1.bf16.msra.mxu0 0
    %305 = vmatprep.subr.bf16.mxu0 0
    %306 = vmatpush1.bf16.msra.mxu0 0
    %307 = vmatprep.subr.bf16.mxu0 0
    %308 = vmatpush1.bf16.msra.mxu0 0
    %309 = vmatprep.subr.bf16.mxu0 0
    %310 = vmatpush1.bf16.msra.mxu0 0
    %311 = vmatprep.subr.bf16.mxu0 0
    %312 = vmatpush1.bf16.msra.mxu0 0
    %313 = vmatprep.subr.bf16.mxu0 0
    %314 = vmatpush1.bf16.msra.mxu0 0
    %315 = vmatprep.subr.bf16.mxu0 0
    %316 = vmatpush1.bf16.msra.mxu0 0
    %317 = vmatprep.subr.bf16.mxu0 0
    %318 = vmatpush1.bf16.msra.mxu0 0
    %319 = vmatprep.mubr.bf16.mxu0 0
    %320 = vmatmul.mubr.bf16.gmra.mrb[0].mxu0 %v234
    %v321 = vpop.f32.mrb[0].mxu0
    %v322 = vadd.f32 %v238, %v321
    %v323 = vpop.f32.mrb[0].mxu0
    %v324 = vpop.f32.mrb[0].mxu0
    %v325 = vpop.f32.mrb[0].mxu0
    %326 = vdwg.mxu0
    %327 = vst [vmem:[#allocation7] sm:$0xff] %v322
    // Predicated region
    $region22: #{tpu_custom_call.1} parent=1 // pred_check
      _
    $region23: #{tpu_custom_call.1} parent=1 // pred_check_branch
      %329 = sbr.rel (0) target = $region25
    $region24: #{tpu_custom_call.1} parent=1 // pred_region
      %s331 = ssub.s32 128, 128
      %332 = vsyncadd [#allocation4], %s331
      %s334 = sshll.u32 [#allocation7], 4
      %s335 = int_to_ptr.vmem [resolvable:$true] %s334
      %337 = dma.vmem_to_hbm [thread:$0]  %s335, 128, %s3, [#allocation4]
    $region25: #{tpu_custom_call.1} parent=1 // pred_fallthru
      _
    // Predicated region
    $region26: #{tpu_custom_call.1} parent=1 // pred_check
      _
    $region27: #{tpu_custom_call.1} parent=1 // pred_check_branch
      %339 = sbr.rel (0) target = $region29
    $region28: #{tpu_custom_call.1} parent=1 // pred_region
      %340 = dma.done [#allocation4], 128
    $region29: #{tpu_custom_call.1} parent=1 // pred_fallthru
      _
    %341 = vsyncpa [#allocation3], 1
    %342 = vsyncpa [#allocation6], 1
    %343 = vsyncpa [#allocation4], 1

</llo_original>
